<compile_context>
chip_gen: v6e
topology: v6e:2x2x1
jax: 0.10.0
libtpu: 0.0.40
codegen_flags: <defaults>
</compile_context>

<pallas_src>
import jax
import jax.numpy as jnp
from jax.experimental import pallas as pl
from jax.experimental.pallas import tpu as pltpu

STATE_DIM = 5
ACTION_DIM = 3
H1 = 128   # feature_extractor hidden 1
H2 = 64    # feature_extractor hidden 2 (shared features)
H3 = 32    # actor / critic hidden
LANES = 128

# bf16 weight-slab row layout (384, 128)
W2_OFF = 0          # rows 0..127, cols 0..63   : W2 (128,64)
WH1_OFF = 128       # rows 128..191, cols 0..63 : [wa1 | wc1] (64,64)
WH2_OFF = 256       # rows 256..287 cols 0..2 = wa2 ; rows 288..319 col 3 = wc2
W_SLAB_ROWS = 384

# f32 slab row layout (16, 128)
W1_OFF = 0          # rows 0..4 : W1 (5,128) f32
B1_ROW = 8
B2_ROW = 9
BH1_ROW = 10
BH2_ROW = 11
FB_ROWS = 16

SMALL_BATCH_MAX = 1024    # grid-less path up to here
MAX_BATCH_BLOCK = 1024    # batch tile for the gridded path


def _ceil_div(a, b):
    return -(-a // b)


def _round_up(a, b):
    return _ceil_div(a, b) * b


def actor_critic_kernel(x_ref, w_ref, fb_ref, probs_ref, value_ref):
    x = x_ref[...]                      # (BB, 5) f32 raw state
    fb = fb_ref[...]                    # (16, 128) f32 : W1 rows + biases

    # ---- Layer 1: Linear(5,128) + ReLU as f32 outer-product accumulation.
    # K=5 is tiny, so keep it off the MXU and avoid any input lane padding.
    acc = x[:, 0:1] * fb[W1_OFF:W1_OFF + 1, :] + fb[B1_ROW:B1_ROW + 1, :]
    for k in range(1, STATE_DIM):
        acc = acc + x[:, k:k + 1] * fb[W1_OFF + k:W1_OFF + k + 1, :]
    h1 = jnp.maximum(acc, 0.0)                                        # (BB,128) f32

    # ---- remaining three layers: bf16 MXU matmuls, f32 accumulation.
    w2 = w_ref[W2_OFF:W2_OFF + H1, :]       # (128,128) bf16 (cols>=64 zero)
    wh1 = w_ref[WH1_OFF:WH1_OFF + LANES, :]  # (128,128) bf16 fused [wa1|wc1]
    wh2 = w_ref[WH2_OFF:WH2_OFF + LANES, :]  # (128,128) bf16 block-diag heads
    b2 = fb[B2_ROW:B2_ROW + 1, :]
    bh1 = fb[BH1_ROW:BH1_ROW + 1, :]
    bh2 = fb[BH2_ROW:BH2_ROW + 1, :]

    feat = jnp.dot(h1.astype(jnp.bfloat16), w2,
                   preferred_element_type=jnp.float32) + b2           # lanes>=64 == 0
    feat = jnp.maximum(feat, 0.0)

    # fused actor/critic hidden: lanes 0..31 = actor hidden, 32..63 = critic hidden
    h = jnp.dot(feat.astype(jnp.bfloat16), wh1,
                preferred_element_type=jnp.float32) + bh1
    h = jnp.maximum(h, 0.0)

    # fused head: lanes 0..2 = actor logits, lane 3 = state value
    # TODO(synk): could contract only the live K=64 here; skipped to avoid relayout.
    z = jnp.dot(h.astype(jnp.bfloat16), wh2,
                preferred_element_type=jnp.float32) + bh2              # (BB,128)

    # masked softmax over the 3 logit lanes (f32, exact normalization)
    col = jax.lax.broadcasted_iota(jnp.int32, z.shape, 1)
    is_logit = col < ACTION_DIM
    zm = jnp.where(is_logit, z, -jnp.inf)
    m = jnp.max(zm, axis=-1, keepdims=True)
    e = jnp.exp(zm - m)                         # masked lanes: exp(-inf) = 0, no inf/NaN
    denom = jnp.sum(e, axis=-1, keepdims=True)
    probs = e / denom                            # exact divide -> probs sum to 1

    probs_ref[...] = probs[:, :ACTION_DIM]                             # (BB,3)
    value_ref[...] = z[:, ACTION_DIM:ACTION_DIM + 1]                   # (BB,1)


def pack_params(params):
    """Pack the 12 logical (in,out)-layout tensors into (bf16 weight slab, f32 slab)."""
    (w1, b1, w2, b2, wa1, ba1, wa2, ba2, wc1, bc1, wc2, bc2) = params

    W = jnp.zeros((W_SLAB_ROWS, LANES), jnp.float32)
    W = W.at[W2_OFF:W2_OFF + H1, 0:H2].set(w2)                      # (128,64)
    W = W.at[WH1_OFF:WH1_OFF + H2, 0:H3].set(wa1)                   # actor hidden
    W = W.at[WH1_OFF:WH1_OFF + H2, H3:2 * H3].set(wc1)              # critic hidden
    W = W.at[WH2_OFF:WH2_OFF + H3, 0:ACTION_DIM].set(wa2)           # actor out
    W = W.at[WH2_OFF + H3:WH2_OFF + 2 * H3,
             ACTION_DIM:ACTION_DIM + 1].set(wc2)                    # critic out
    W = W.astype(jnp.bfloat16)

    FB = jnp.zeros((FB_ROWS, LANES), jnp.float32)
    FB = FB.at[W1_OFF:W1_OFF + STATE_DIM, :].set(w1)                # (5,128) f32
    FB = FB.at[B1_ROW, :].set(b1[0])
    FB = FB.at[B2_ROW, 0:H2].set(b2[0])
    FB = FB.at[BH1_ROW, 0:H3].set(ba1[0])
    FB = FB.at[BH1_ROW, H3:2 * H3].set(bc1[0])
    FB = FB.at[BH2_ROW, 0:ACTION_DIM].set(ba2[0])
    FB = FB.at[BH2_ROW, ACTION_DIM:ACTION_DIM + 1].set(bc2[0])
    return W, FB


def actor_critic_forward(state, packed):
    """state: (B, STATE_DIM) f32. Returns (action_probs (B,3), state_value (B,1))."""
    W, FB = packed
    x = state.astype(jnp.float32)
    B = x.shape[0]

    if B <= SMALL_BATCH_MAX:
        # Small batch: grid-less, whole arrays in VMEM, narrow outputs straight
        # from the kernel (no wrapper slice/pad kernels).
        probs, value = pl.pallas_call(
            actor_critic_kernel,
            out_shape=(jax.ShapeDtypeStruct((B, ACTION_DIM), jnp.float32),
                       jax.ShapeDtypeStruct((B, 1), jnp.float32)),
            in_specs=[pl.BlockSpec(memory_space=pltpu.MemorySpace.VMEM)] * 3,
            out_specs=(pl.BlockSpec(memory_space=pltpu.MemorySpace.VMEM),
                       pl.BlockSpec(memory_space=pltpu.MemorySpace.VMEM)),
        )(x, W, FB)
        return probs, value

    # Large batch: tile the batch; tile is big (>=0.35us overhead amortized) but
    # capped so the grid keeps >=2 steps for v7x's two TensorCores.
    bb = min(MAX_BATCH_BLOCK, _round_up(_ceil_div(B, 2), 128))
    nb = _ceil_div(B, bb)
    Bp = nb * bb
    if Bp != B:
        x = jnp.pad(x, ((0, Bp - B), (0, 0)))   # cheap: 20 B/row, only when ragged

    probs, value = pl.pallas_call(
        actor_critic_kernel,
        out_shape=(jax.ShapeDtypeStruct((Bp, ACTION_DIM), jnp.float32),
                   jax.ShapeDtypeStruct((Bp, 1), jnp.float32)),
        grid=(nb,),
        in_specs=[
            pl.BlockSpec((bb, STATE_DIM), lambda i: (i, 0)),
            pl.BlockSpec((W_SLAB_ROWS, LANES), lambda i: (0, 0)),   # resident
            pl.BlockSpec((FB_ROWS, LANES), lambda i: (0, 0)),       # resident
        ],
        out_specs=(pl.BlockSpec((bb, ACTION_DIM), lambda i: (i, 0)),
                   pl.BlockSpec((bb, 1), lambda i: (i, 0))),
        compiler_params=pltpu.CompilerParams(
            dimension_semantics=("parallel",)),
    )(x, W, FB)
    return probs[:B], value[:B]


def init_params(key):
    """Deterministic synthetic parameters matching the PyTorch module's shapes
    (Linear weights stored as (in_features, out_features): y = x @ W + b)."""
    def linear(key, fan_in, fan_out):
        kw, kb = jax.random.split(key)
        bound = 1.0 / jnp.sqrt(fan_in)
        w = jax.random.uniform(kw, (fan_in, fan_out), jnp.float32, -bound, bound)
        b = jax.random.uniform(kb, (1, fan_out), jnp.float32, -bound, bound)
        return w, b

    keys = jax.random.split(key, 6)
    w1, b1 = linear(keys[0], STATE_DIM, H1)     # feature_extractor[0]
    w2, b2 = linear(keys[1], H1, H2)            # feature_extractor[2]
    wa1, ba1 = linear(keys[2], H2, H3)          # actor[0]
    wa2, ba2 = linear(keys[3], H3, ACTION_DIM)  # actor[2]
    wc1, bc1 = linear(keys[4], H2, H3)          # critic[0]
    wc2, bc2 = linear(keys[5], H3, 1)           # critic[2]
    return (w1, b1, w2, b2, wa1, ba1, wa2, ba2, wc1, bc1, wc2, bc2)


def reference_forward(state, params):
    """Pure f32 reference — exact semantics of the PyTorch module."""
    (w1, b1, w2, b2, wa1, ba1, wa2, ba2, wc1, bc1, wc2, bc2) = params
    h1 = jnp.maximum(state @ w1 + b1, 0.0)
    feat = jnp.maximum(h1 @ w2 + b2, 0.0)
    a1 = jnp.maximum(feat @ wa1 + ba1, 0.0)
    logits = a1 @ wa2 + ba2
    probs = jax.nn.softmax(logits, axis=-1)
    c1 = jnp.maximum(feat @ wc1 + bc1, 0.0)
    value = c1 @ wc2 + bc2
    return probs, value


def reference_forward_mirror(state, params):
    """Reference mirroring the kernel numerics (layer-1 f32, later matmuls bf16)."""
    (w1, b1, w2, b2, wa1, ba1, wa2, ba2, wc1, bc1, wc2, bc2) = params

    def mm(a, w):
        return jnp.dot(a.astype(jnp.bfloat16), w.astype(jnp.bfloat16),
                       preferred_element_type=jnp.float32)

    h1 = jnp.maximum(state @ w1 + b1, 0.0)          # f32, matches kernel layer 1
    feat = jnp.maximum(mm(h1, w2) + b2, 0.0)
    a1 = jnp.maximum(mm(feat, wa1) + ba1, 0.0)
    logits = mm(a1, wa2) + ba2
    probs = jax.nn.softmax(logits, axis=-1)
    c1 = jnp.maximum(mm(feat, wc1) + bc1, 0.0)
    value = mm(c1, wc2) + bc2
    return probs, value


if __name__ == "__main__":
    key = jax.random.PRNGKey(0)
    k_param, k_state = jax.random.split(key)

    params = init_params(k_param)
    packed = pack_params(params)

    # ---- small batch: grid-less path (typical RL action selection)
    batch = 8
    state = jax.random.normal(k_state, (batch, STATE_DIM), dtype=jnp.float32)
    probs, value = jax.block_until_ready(actor_critic_forward(state, packed))

    probs_m, value_m = reference_forward_mirror(state, params)  # kernel-numerics ref
    probs_f, value_f = reference_forward(state, params)         # pure f32 module ref

    assert probs.shape == (batch, ACTION_DIM)
    assert value.shape == (batch, 1)
    assert jnp.allclose(probs, probs_m, atol=5e-3, rtol=5e-3)
    assert jnp.allclose(value, value_m, atol=5e-3, rtol=5e-3)
    assert jnp.allclose(probs, probs_f, atol=5e-2, rtol=5e-2)
    assert jnp.allclose(value, value_f, atol=5e-2, rtol=5e-2)
    assert jnp.allclose(jnp.sum(probs, axis=-1), 1.0, atol=1e-5)

    # ---- large batch: batch-tiled, megacore-parallel path (ragged -> row pad)
    big = 2600
    state_big = jax.random.normal(jax.random.PRNGKey(1), (big, STATE_DIM),
                                  dtype=jnp.float32)
    probs_b, value_b = jax.block_until_ready(actor_critic_forward(state_big, packed))
    probs_bm, value_bm = reference_forward_mirror(state_big, params)
    assert probs_b.shape == (big, ACTION_DIM)
    assert value_b.shape == (big, 1)
    assert jnp.allclose(probs_b, probs_bm, atol=5e-3, rtol=5e-3)
    assert jnp.allclose(value_b, value_bm, atol=5e-3, rtol=5e-3)
    assert jnp.allclose(jnp.sum(probs_b, axis=-1), 1.0, atol=1e-5)

    print("KERNEL_OK")
</pallas_src>

<mosaic_0001>
module attributes {stable_mosaic.version = 11 : i64} {
  func.func @actor_critic_kernel(%arg0: memref<8x5xf32, #tpu.memory_space<vmem>>, %arg1: memref<384x128xbf16, #tpu.memory_space<vmem>>, %arg2: memref<16x128xf32, #tpu.memory_space<vmem>>, %arg3: memref<8x3xf32, #tpu.memory_space<vmem>>, %arg4: memref<8x1xf32, #tpu.memory_space<vmem>>) attributes {dimension_semantics = [], scalar_prefetch = 0 : i64, scratch_operands = 0 : i64, tpu.core_type = #tpu.core_type<tc>} {
    %c0 = arith.constant 0 : index
    %c0_0 = arith.constant 0 : index
    %0 = vector.load %arg0[%c0, %c0_0] : memref<8x5xf32, #tpu.memory_space<vmem>>, vector<8x5xf32>
    %c0_1 = arith.constant 0 : index
    %c0_2 = arith.constant 0 : index
    %1 = vector.load %arg2[%c0_1, %c0_2] : memref<16x128xf32, #tpu.memory_space<vmem>>, vector<16x128xf32>
    %2 = vector.extract_strided_slice %0 {offsets = [0, 0], sizes = [8, 1], strides = [1, 1]} : vector<8x5xf32> to vector<8x1xf32>
    %3 = vector.extract_strided_slice %1 {offsets = [0, 0], sizes = [1, 128], strides = [1, 1]} : vector<16x128xf32> to vector<1x128xf32>
    %4 = vector.broadcast %2 : vector<8x1xf32> to vector<8x128xf32>
    %5 = vector.broadcast %3 : vector<1x128xf32> to vector<8x128xf32>
    %6 = arith.mulf %4, %5 : vector<8x128xf32>
    %7 = vector.extract_strided_slice %1 {offsets = [8, 0], sizes = [1, 128], strides = [1, 1]} : vector<16x128xf32> to vector<1x128xf32>
    %8 = vector.broadcast %7 : vector<1x128xf32> to vector<8x128xf32>
    %9 = arith.addf %6, %8 : vector<8x128xf32>
    %10 = vector.extract_strided_slice %0 {offsets = [0, 1], sizes = [8, 1], strides = [1, 1]} : vector<8x5xf32> to vector<8x1xf32>
    %11 = vector.extract_strided_slice %1 {offsets = [1, 0], sizes = [1, 128], strides = [1, 1]} : vector<16x128xf32> to vector<1x128xf32>
    %12 = vector.broadcast %10 : vector<8x1xf32> to vector<8x128xf32>
    %13 = vector.broadcast %11 : vector<1x128xf32> to vector<8x128xf32>
    %14 = arith.mulf %12, %13 : vector<8x128xf32>
    %15 = arith.addf %9, %14 : vector<8x128xf32>
    %16 = vector.extract_strided_slice %0 {offsets = [0, 2], sizes = [8, 1], strides = [1, 1]} : vector<8x5xf32> to vector<8x1xf32>
    %17 = vector.extract_strided_slice %1 {offsets = [2, 0], sizes = [1, 128], strides = [1, 1]} : vector<16x128xf32> to vector<1x128xf32>
    %18 = vector.broadcast %16 : vector<8x1xf32> to vector<8x128xf32>
    %19 = vector.broadcast %17 : vector<1x128xf32> to vector<8x128xf32>
    %20 = arith.mulf %18, %19 : vector<8x128xf32>
    %21 = arith.addf %15, %20 : vector<8x128xf32>
    %22 = vector.extract_strided_slice %0 {offsets = [0, 3], sizes = [8, 1], strides = [1, 1]} : vector<8x5xf32> to vector<8x1xf32>
    %23 = vector.extract_strided_slice %1 {offsets = [3, 0], sizes = [1, 128], strides = [1, 1]} : vector<16x128xf32> to vector<1x128xf32>
    %24 = vector.broadcast %22 : vector<8x1xf32> to vector<8x128xf32>
    %25 = vector.broadcast %23 : vector<1x128xf32> to vector<8x128xf32>
    %26 = arith.mulf %24, %25 : vector<8x128xf32>
    %27 = arith.addf %21, %26 : vector<8x128xf32>
    %28 = vector.extract_strided_slice %0 {offsets = [0, 4], sizes = [8, 1], strides = [1, 1]} : vector<8x5xf32> to vector<8x1xf32>
    %29 = vector.extract_strided_slice %1 {offsets = [4, 0], sizes = [1, 128], strides = [1, 1]} : vector<16x128xf32> to vector<1x128xf32>
    %30 = vector.broadcast %28 : vector<8x1xf32> to vector<8x128xf32>
    %31 = vector.broadcast %29 : vector<1x128xf32> to vector<8x128xf32>
    %32 = arith.mulf %30, %31 : vector<8x128xf32>
    %33 = arith.addf %27, %32 : vector<8x128xf32>
    %cst = arith.constant 0.000000e+00 : f32
    %34 = vector.broadcast %cst : f32 to vector<8x128xf32>
    %35 = arith.maximumf %33, %34 : vector<8x128xf32>
    %c0_3 = arith.constant 0 : index
    %c0_4 = arith.constant 0 : index
    %36 = vector.load %arg1[%c0_3, %c0_4] : memref<384x128xbf16, #tpu.memory_space<vmem>>, vector<128x128xbf16>
    %c128 = arith.constant 128 : index
    %c0_5 = arith.constant 0 : index
    %37 = vector.load %arg1[%c128, %c0_5] : memref<384x128xbf16, #tpu.memory_space<vmem>>, vector<128x128xbf16>
    %c256 = arith.constant 256 : index
    %c0_6 = arith.constant 0 : index
    %38 = vector.load %arg1[%c256, %c0_6] : memref<384x128xbf16, #tpu.memory_space<vmem>>, vector<128x128xbf16>
    %39 = vector.extract_strided_slice %1 {offsets = [9, 0], sizes = [1, 128], strides = [1, 1]} : vector<16x128xf32> to vector<1x128xf32>
    %40 = vector.extract_strided_slice %1 {offsets = [10, 0], sizes = [1, 128], strides = [1, 1]} : vector<16x128xf32> to vector<1x128xf32>
    %41 = vector.extract_strided_slice %1 {offsets = [11, 0], sizes = [1, 128], strides = [1, 1]} : vector<16x128xf32> to vector<1x128xf32>
    %42 = arith.truncf %35 : vector<8x128xf32> to vector<8x128xbf16>
    %cst_7 = arith.constant dense<0.000000e+00> : vector<8x128xf32>
    %43 = tpu.matmul %42, %36, %cst_7 {dimension_numbers = #tpu.dot_dimension_numbers<[1], [0], [0], [1], [0, 0, 1, 1], [], []>} : vector<8x128xbf16>, vector<128x128xbf16>, vector<8x128xf32> -> vector<8x128xf32>
    %44 = vector.broadcast %39 : vector<1x128xf32> to vector<8x128xf32>
    %45 = arith.addf %43, %44 : vector<8x128xf32>
    %cst_8 = arith.constant 0.000000e+00 : f32
    %46 = vector.broadcast %cst_8 : f32 to vector<8x128xf32>
    %47 = arith.maximumf %45, %46 : vector<8x128xf32>
    %48 = arith.truncf %47 : vector<8x128xf32> to vector<8x128xbf16>
    %cst_9 = arith.constant dense<0.000000e+00> : vector<8x128xf32>
    %49 = tpu.matmul %48, %37, %cst_9 {dimension_numbers = #tpu.dot_dimension_numbers<[1], [0], [0], [1], [0, 0, 1, 1], [], []>} : vector<8x128xbf16>, vector<128x128xbf16>, vector<8x128xf32> -> vector<8x128xf32>
    %50 = vector.broadcast %40 : vector<1x128xf32> to vector<8x128xf32>
    %51 = arith.addf %49, %50 : vector<8x128xf32>
    %cst_10 = arith.constant 0.000000e+00 : f32
    %52 = vector.broadcast %cst_10 : f32 to vector<8x128xf32>
    %53 = arith.maximumf %51, %52 : vector<8x128xf32>
    %54 = arith.truncf %53 : vector<8x128xf32> to vector<8x128xbf16>
    %cst_11 = arith.constant dense<0.000000e+00> : vector<8x128xf32>
    %55 = tpu.matmul %54, %38, %cst_11 {dimension_numbers = #tpu.dot_dimension_numbers<[1], [0], [0], [1], [0, 0, 1, 1], [], []>} : vector<8x128xbf16>, vector<128x128xbf16>, vector<8x128xf32> -> vector<8x128xf32>
    %56 = vector.broadcast %41 : vector<1x128xf32> to vector<8x128xf32>
    %57 = arith.addf %55, %56 : vector<8x128xf32>
    %58 = tpu.iota {dimensions = array<i32: 1>} : vector<8x128xi32>
    %c3_i32 = arith.constant 3 : i32
    %59 = vector.broadcast %c3_i32 : i32 to vector<8x128xi32>
    %60 = arith.cmpi slt, %58, %59 : vector<8x128xi32>
    %cst_12 = arith.constant 0xFF800000 : f32
    %61 = vector.broadcast %cst_12 : f32 to vector<8x128xf32>
    %62 = arith.select %60, %57, %61 : vector<8x128xi1>, vector<8x128xf32>
    %cst_13 = arith.constant dense<0xFF800000> : vector<8xf32>
    %63 = vector.multi_reduction <maximumf>, %62, %cst_13 [1] : vector<8x128xf32> to vector<8xf32>
    %64 = vector.shape_cast %63 : vector<8xf32> to vector<8x1xf32>
    %65 = vector.broadcast %64 : vector<8x1xf32> to vector<8x128xf32>
    %66 = arith.subf %62, %65 : vector<8x128xf32>
    %67 = math.exp %66 : vector<8x128xf32>
    %cst_14 = arith.constant dense<0.000000e+00> : vector<8xf32>
    %68 = vector.multi_reduction <add>, %67, %cst_14 [1] : vector<8x128xf32> to vector<8xf32>
    %69 = vector.shape_cast %68 : vector<8xf32> to vector<8x1xf32>
    %70 = vector.broadcast %69 : vector<8x1xf32> to vector<8x128xf32>
    %71 = arith.divf %67, %70 : vector<8x128xf32>
    %72 = vector.extract_strided_slice %71 {offsets = [0, 0], sizes = [8, 3], strides = [1, 1]} : vector<8x128xf32> to vector<8x3xf32>
    %c0_15 = arith.constant 0 : index
    %c0_16 = arith.constant 0 : index
    %73 = vector.load %arg3[%c0_15, %c0_16] : memref<8x3xf32, #tpu.memory_space<vmem>>, vector<8x3xf32>
    tpu.vector_store %arg3[%c0_15, %c0_16], %72 {strides = array<i32>} : memref<8x3xf32, #tpu.memory_space<vmem>>, vector<8x3xf32>,
    %74 = vector.extract_strided_slice %57 {offsets = [0, 3], sizes = [8, 1], strides = [1, 1]} : vector<8x128xf32> to vector<8x1xf32>
    %c0_17 = arith.constant 0 : index
    %c0_18 = arith.constant 0 : index
    %75 = vector.load %arg4[%c0_17, %c0_18] : memref<8x1xf32, #tpu.memory_space<vmem>>, vector<8x1xf32>
    tpu.vector_store %arg4[%c0_17, %c0_18], %74 {strides = array<i32>} : memref<8x1xf32, #tpu.memory_space<vmem>>, vector<8x1xf32>,
    return
  }
}

</mosaic_0001>

<llo_original>
// kernel: tpu_custom_call.1
$region0: #{tpu_custom_call.1}
  #allocation0 [shape = 'u32[]', space=smem, size = 0x4, offset = 0x4, fixed_abs, tag = 'smem constant byte address 0x4 - core index']
  #allocation1 [shape = 'u32[144,128]{1,0:T(1,128)}', space=vmem, size = 0x12000, scoped, tag = 'internal scratch']
  %s0 = inlined_call_operand.hbm [shape: f32[8,5], index: 0, kind: input, shape index: {}]
  %s1 = inlined_call_operand.hbm [shape: bf16[384,128], index: 1, kind: input, shape index: {}]
  %s2 = inlined_call_operand.hbm [shape: f32[16,128], index: 2, kind: input, shape index: {}]
  %s3 = inlined_call_operand.vmem [shape: f32[8,3], index: 3, kind: output, shape index: {0}]
  %s4 = inlined_call_operand.vmem [shape: f32[8,1], index: 4, kind: output, shape index: {1}]
  %5 = xla_tuple %s3, %s4
  %s6 = sld [smem:[#allocation0]]
  $region42: #{tpu_custom_call.1} parent=0
    _
  %s8 = ssub.s32 1, %s6
  %s9 = scalar_select 0, %s8, %s6
  $region1: #{tpu_custom_call.1} parent=0
    #allocation2 [shape = 'u8[4096]{0}', space=vmem, size = 0x1000, scoped, tag = 'input window, operand 0, single buffered']
    #allocation3 [shape = 's32[1]{0}', space=sflag, size = 0x4, scoped, tag = 'scoped memory for tpu_custom_call.1']
    #allocation4 [shape = 'u8[98304]{0}', space=vmem, size = 0x18000, scoped, tag = 'input window, operand 1, single buffered']
    #allocation5 [shape = 's32[1]{0}', space=sflag, size = 0x4, scoped, tag = 'scoped memory for tpu_custom_call.1']
    #allocation6 [shape = 'u8[8192]{0}', space=vmem, size = 0x2000, scoped, tag = 'input window, operand 2, single buffered']
    %10 = vsyncpa [#allocation3], 0
    %11 = vsyncpa [#allocation5], 0
    // Predicated region
    $region2: #{tpu_custom_call.1} parent=1 // pred_check
      _
    $region3: #{tpu_custom_call.1} parent=1 // pred_check_branch
      %13 = sbr.rel (0) target = $region5
    $region4: #{tpu_custom_call.1} parent=1 // pred_region
      %s15 = ssub.s32 128, 128
      %16 = vsyncadd [#allocation3], %s15
      %s18 = sshll.u32 [#allocation2], 4
      %s19 = int_to_ptr.vmem [resolvable:$true] %s18
      %21 = dma.hbm_to_vmem [thread:$0]  %s0, 128, %s19, [#allocation3]
    $region5: #{tpu_custom_call.1} parent=1 // pred_fallthru
      _
    // Predicated region
    $region6: #{tpu_custom_call.1} parent=1 // pred_check
      _
    $region7: #{tpu_custom_call.1} parent=1 // pred_check_branch
      %23 = sbr.rel (0) target = $region9
    $region8: #{tpu_custom_call.1} parent=1 // pred_region
      %s25 = ssub.s32 3072, 3072
      %26 = vsyncadd [#allocation5], %s25
      %s27 = sshll.u32 [#allocation4], 4
      %s28 = int_to_ptr.vmem [resolvable:$true] %s27
      %33 = dma.hbm_to_vmem [thread:$0]  %s1, 3072, %s28, [#allocation5], 64, 64, 4
    $region9: #{tpu_custom_call.1} parent=1 // pred_fallthru
      _
    // Predicated region
    $region10: #{tpu_custom_call.1} parent=1 // pred_check
      _
    $region11: #{tpu_custom_call.1} parent=1 // pred_check_branch
      %35 = sbr.rel (0) target = $region13
    $region12: #{tpu_custom_call.1} parent=1 // pred_region
      %s37 = ssub.s32 256, 256
      %38 = vsyncadd [#allocation5], %s37
      %s39 = sshll.u32 [#allocation6], 4
      %s40 = int_to_ptr.vmem [resolvable:$true] %s39
      %45 = dma.hbm_to_vmem [thread:$0]  %s2, 256, %s40, [#allocation5], 128, 128, 8
    $region13: #{tpu_custom_call.1} parent=1 // pred_fallthru
      _
    // Predicated region
    $region14: #{tpu_custom_call.1} parent=1 // pred_check
      _
    $region15: #{tpu_custom_call.1} parent=1 // pred_check_branch
      %47 = sbr.rel (0) target = $region17
    $region16: #{tpu_custom_call.1} parent=1 // pred_region
      %48 = dma.done [#allocation3], 128
    $region17: #{tpu_custom_call.1} parent=1 // pred_fallthru
      _
    // Predicated region
    $region18: #{tpu_custom_call.1} parent=1 // pred_check
      _
    $region19: #{tpu_custom_call.1} parent=1 // pred_check_branch
      %50 = sbr.rel (0) target = $region21
    $region20: #{tpu_custom_call.1} parent=1 // pred_region
      %51 = dma.done [#allocation5], 3072
    $region21: #{tpu_custom_call.1} parent=1 // pred_fallthru
      _
    // Predicated region
    $region22: #{tpu_custom_call.1} parent=1 // pred_check
      _
    $region23: #{tpu_custom_call.1} parent=1 // pred_check_branch
      %53 = sbr.rel (0) target = $region25
    $region24: #{tpu_custom_call.1} parent=1 // pred_region
      %54 = dma.done [#allocation5], 256
    $region25: #{tpu_custom_call.1} parent=1 // pred_fallthru
      _
    %v56 = vld [vmem:[#allocation2] sm:$0xff]
    %v57 = vld [vmem:[#allocation6] sm:$0xff]
    %v58 = vld [vmem:[#allocation6 + $0x8] sm:$0xff]
    %60 = vset.pattern.permute.xlu0 0
    %61 = vperm.xlu0 %60, %v56
    %v62 = vpop.permute.xlu0 %61
    %v64 = vlaneseq
    %v65 = vshrl.u32 %v64, 7
    %v66 = vsub.s32 0, %v65
    %v67 = vrot.slane %v57, %v66
    %v68 = vmul.f32 %v62, %v67
    %v69 = vlaneseq
    %v70 = vshrl.u32 %v69, 7
    %v71 = vsub.s32 0, %v70
    %v72 = vrot.slane %v58, %v71
    %v73 = vadd.f32 %v68, %v72
    %74 = vset.pattern.permute.xlu0 1
    %75 = vperm.xlu0 %74, %v56
    %v76 = vpop.permute.xlu0 %75
    %v78 = vlaneseq
    %v79 = vshrl.u32 %v78, 7
    %v80 = vsub.s32 1, %v79
    %v81 = vrot.slane %v57, %v80
    %v82 = vmul.f32 %v76, %v81
    %v83 = vadd.f32 %v73, %v82
    %84 = vset.pattern.permute.xlu0 2
    %85 = vperm.xlu0 %84, %v56
    %v86 = vpop.permute.xlu0 %85
    %v88 = vlaneseq
    %v89 = vshrl.u32 %v88, 7
    %v90 = vsub.s32 2, %v89
    %v91 = vrot.slane %v57, %v90
    %v92 = vmul.f32 %v86, %v91
    %v93 = vadd.f32 %v83, %v92
    %94 = vset.pattern.permute.xlu0 3
    %95 = vperm.xlu0 %94, %v56
    %v96 = vpop.permute.xlu0 %95
    %v98 = vlaneseq
    %v99 = vshrl.u32 %v98, 7
    %v100 = vsub.s32 3, %v99
    %v101 = vrot.slane %v57, %v100
    %v102 = vmul.f32 %v96, %v101
    %v103 = vadd.f32 %v93, %v102
    %104 = vset.pattern.permute.xlu0 4
    %105 = vperm.xlu0 %104, %v56
    %v106 = vpop.permute.xlu0 %105
    %v108 = vlaneseq
    %v109 = vshrl.u32 %v108, 7
    %v110 = vsub.s32 4, %v109
    %v111 = vrot.slane %v57, %v110
    %v112 = vmul.f32 %v106, %v111
    %v113 = vadd.f32 %v103, %v112
    %v114 = vmax.f32 %v113, 0.0
    %v115 = vld [vmem:[#allocation4] sm:$0xf]
    %v116 = vld [vmem:[#allocation4 + $0x4] sm:$0xf]
    %v117 = vld [vmem:[#allocation4 + $0x8] sm:$0xf]
    %v118 = vld [vmem:[#allocation4 + $0xc] sm:$0xf]
    %v119 = vld [vmem:[#allocation4 + $0x10] sm:$0xf]
    %v120 = vld [vmem:[#allocation4 + $0x14] sm:$0xf]
    %v121 = vld [vmem:[#allocation4 + $0x18] sm:$0xf]
    %v122 = vld [vmem:[#allocation4 + $0x1c] sm:$0xf]
    %v123 = vld [vmem:[#allocation4 + $0x20] sm:$0xf]
    %v124 = vld [vmem:[#allocation4 + $0x24] sm:$0xf]
    %v125 = vld [vmem:[#allocation4 + $0x28] sm:$0xf]
    %v126 = vld [vmem:[#allocation4 + $0x2c] sm:$0xf]
    %v127 = vld [vmem:[#allocation4 + $0x30] sm:$0xf]
    %v128 = vld [vmem:[#allocation4 + $0x34] sm:$0xf]
    %v129 = vld [vmem:[#allocation4 + $0x38] sm:$0xf]
    %v130 = vld [vmem:[#allocation4 + $0x3c] sm:$0xf]
    %v131 = vld [vmem:[#allocation4 + $0x40] sm:$0xf]
    %v132 = vld [vmem:[#allocation4 + $0x44] sm:$0xf]
    %v133 = vld [vmem:[#allocation4 + $0x48] sm:$0xf]
    %v134 = vld [vmem:[#allocation4 + $0x4c] sm:$0xf]
    %v135 = vld [vmem:[#allocation4 + $0x50] sm:$0xf]
    %v136 = vld [vmem:[#allocation4 + $0x54] sm:$0xf]
    %v137 = vld [vmem:[#allocation4 + $0x58] sm:$0xf]
    %v138 = vld [vmem:[#allocation4 + $0x5c] sm:$0xf]
    %v139 = vld [vmem:[#allocation4 + $0x60] sm:$0xf]
    %v140 = vld [vmem:[#allocation4 + $0x64] sm:$0xf]
    %v141 = vld [vmem:[#allocation4 + $0x68] sm:$0xf]
    %v142 = vld [vmem:[#allocation4 + $0x6c] sm:$0xf]
    %v143 = vld [vmem:[#allocation4 + $0x70] sm:$0xf]
    %v144 = vld [vmem:[#allocation4 + $0x74] sm:$0xf]
    %v145 = vld [vmem:[#allocation4 + $0x78] sm:$0xf]
    %v146 = vld [vmem:[#allocation4 + $0x7c] sm:$0xf]
    %v147 = vld [vmem:[#allocation4 + $0x80] sm:$0xf]
    %v148 = vld [vmem:[#allocation4 + $0x84] sm:$0xf]
    %v149 = vld [vmem:[#allocation4 + $0x88] sm:$0xf]
    %v150 = vld [vmem:[#allocation4 + $0x8c] sm:$0xf]
    %v151 = vld [vmem:[#allocation4 + $0x90] sm:$0xf]
    %v152 = vld [vmem:[#allocation4 + $0x94] sm:$0xf]
    %v153 = vld [vmem:[#allocation4 + $0x98] sm:$0xf]
    %v154 = vld [vmem:[#allocation4 + $0x9c] sm:$0xf]
    %v155 = vld [vmem:[#allocation4 + $0xa0] sm:$0xf]
    %v156 = vld [vmem:[#allocation4 + $0xa4] sm:$0xf]
    %v157 = vld [vmem:[#allocation4 + $0xa8] sm:$0xf]
    %v158 = vld [vmem:[#allocation4 + $0xac] sm:$0xf]
    %v159 = vld [vmem:[#allocation4 + $0xb0] sm:$0xf]
    %v160 = vld [vmem:[#allocation4 + $0xb4] sm:$0xf]
    %v161 = vld [vmem:[#allocation4 + $0xb8] sm:$0xf]
    %v162 = vld [vmem:[#allocation4 + $0xbc] sm:$0xf]
    %v163 = vpack.c.bf16 %v114, %v114
    %v164 = vlaneseq
    %v165 = vshrl.u32 %v164, 7
    %v166 = vsub.s32 1, %v165
    %v167 = vrot.slane %v58, %v166
    %v184 = vunpack.c.l.b16 %v115
    %v185 = vunpack.c.l.b16 %v116
    %v186 = vunpack.c.l.b16 %v117
    %v187 = vunpack.c.l.b16 %v118
    %v188 = vunpack.c.l.b16 %v119
    %v189 = vunpack.c.l.b16 %v120
    %v190 = vunpack.c.l.b16 %v121
    %v191 = vunpack.c.l.b16 %v122
    %v192 = vunpack.c.l.b16 %v123
    %v193 = vunpack.c.l.b16 %v124
    %v194 = vunpack.c.l.b16 %v125
    %v195 = vunpack.c.l.b16 %v126
    %v196 = vunpack.c.l.b16 %v127
    %v197 = vunpack.c.l.b16 %v128
    %v198 = vunpack.c.l.b16 %v129
    %v199 = vunpack.c.l.b16 %v130
    %v200 = vpack.c.b16 %v185, %v184
    %v201 = vpack.c.b16 %v187, %v186
    %v202 = vpack.c.b16 %v189, %v188
    %v203 = vpack.c.b16 %v191, %v190
    %v204 = vpack.c.b16 %v193, %v192
    %v205 = vpack.c.b16 %v195, %v194
    %v206 = vpack.c.b16 %v197, %v196
    %v207 = vpack.c.b16 %v199, %v198
    %216 = vmatprep.subr.bf16.mxu0 0
    %217 = vmatpush1.bf16.msra.mxu0 %v207
    %218 = vmatprep.subr.bf16.mxu0 0
    %219 = vmatpush1.bf16.msra.mxu0 %v206
    %220 = vmatprep.subr.bf16.mxu0 0
    %221 = vmatpush1.bf16.msra.mxu0 %v205
    %222 = vmatprep.subr.bf16.mxu0 0
    %223 = vmatpush1.bf16.msra.mxu0 %v204
    %224 = vmatprep.subr.bf16.mxu0 0
    %225 = vmatpush1.bf16.msra.mxu0 %v203
    %226 = vmatprep.subr.bf16.mxu0 0
    %227 = vmatpush1.bf16.msra.mxu0 %v202
    %228 = vmatprep.subr.bf16.mxu0 0
    %229 = vmatpush1.bf16.msra.mxu0 %v201
    %230 = vmatprep.subr.bf16.mxu0 0
    %231 = vmatpush1.bf16.msra.mxu0 %v200
    %232 = vmatprep.subr.bf16.mxu0 0
    %233 = vmatpush2.bf16.msra.mxu0 0
    %234 = vmatprep.subr.bf16.mxu0 0
    %235 = vmatpush2.bf16.msra.mxu0 0
    %236 = vmatprep.subr.bf16.mxu0 0
    %237 = vmatpush2.bf16.msra.mxu0 0
    %238 = vmatprep.subr.bf16.mxu0 0
    %239 = vmatpush2.bf16.msra.mxu0 0
    %240 = vmatprep.subr.bf16.mxu0 0
    %241 = vmatpush2.bf16.msra.mxu0 0
    %242 = vmatprep.subr.bf16.mxu0 0
    %243 = vmatpush2.bf16.msra.mxu0 0
    %244 = vmatprep.subr.bf16.mxu0 0
    %245 = vmatpush2.bf16.msra.mxu0 0
    %246 = vmatprep.subr.bf16.mxu0 0
    %247 = vmatpush2.bf16.msra.mxu0 0
    %248 = vmatprep.mubr.bf16.mxu0 0
    %249 = vmatmul.mubr.bf16.gmra.mxu0 %v163
    %v250 = vpop.f32.mrf.mxu0
    %v251 = vadd.f32 %v167, %v250
    %v252 = vpop.f32.mrf.mxu0
    %v253 = vpop.f32.mrf.mxu0
    %v254 = vpop.f32.mrf.mxu0
    %255 = vdwg.mxu0
    %v256 = vmax.f32 %v251, 0.0
    %v257 = vpack.c.bf16 %v256, %v256
    %v258 = vlaneseq
    %v259 = vshrl.u32 %v258, 7
    %v260 = vsub.s32 2, %v259
    %v261 = vrot.slane %v58, %v260
    %v278 = vunpack.c.l.b16 %v131
    %v279 = vunpack.c.l.b16 %v132
    %v280 = vunpack.c.l.b16 %v133
    %v281 = vunpack.c.l.b16 %v134
    %v282 = vunpack.c.l.b16 %v135
    %v283 = vunpack.c.l.b16 %v136
    %v284 = vunpack.c.l.b16 %v137
    %v285 = vunpack.c.l.b16 %v138
    %v286 = vunpack.c.l.b16 %v139
    %v287 = vunpack.c.l.b16 %v140
    %v288 = vunpack.c.l.b16 %v141
    %v289 = vunpack.c.l.b16 %v142
    %v290 = vunpack.c.l.b16 %v143
    %v291 = vunpack.c.l.b16 %v144
    %v292 = vunpack.c.l.b16 %v145
    %v293 = vunpack.c.l.b16 %v146
    %v294 = vpack.c.b16 %v279, %v278
    %v295 = vpack.c.b16 %v281, %v280
    %v296 = vpack.c.b16 %v283, %v282
    %v297 = vpack.c.b16 %v285, %v284
    %v298 = vpack.c.b16 %v287, %v286
    %v299 = vpack.c.b16 %v289, %v288
    %v300 = vpack.c.b16 %v291, %v290
    %v301 = vpack.c.b16 %v293, %v292
    %310 = vmatprep.subr.bf16.mxu0 0
    %311 = vmatpush1.bf16.msra.mxu0 %v301
    %312 = vmatprep.subr.bf16.mxu0 0
    %313 = vmatpush1.bf16.msra.mxu0 %v300
    %314 = vmatprep.subr.bf16.mxu0 0
    %315 = vmatpush1.bf16.msra.mxu0 %v299
    %316 = vmatprep.subr.bf16.mxu0 0
    %317 = vmatpush1.bf16.msra.mxu0 %v298
    %318 = vmatprep.subr.bf16.mxu0 0
    %319 = vmatpush1.bf16.msra.mxu0 %v297
    %320 = vmatprep.subr.bf16.mxu0 0
    %321 = vmatpush1.bf16.msra.mxu0 %v296
    %322 = vmatprep.subr.bf16.mxu0 0
    %323 = vmatpush1.bf16.msra.mxu0 %v295
    %324 = vmatprep.subr.bf16.mxu0 0
    %325 = vmatpush1.bf16.msra.mxu0 %v294
    %326 = vmatprep.subr.bf16.mxu0 0
    %327 = vmatpush2.bf16.msra.mxu0 0
    %328 = vmatprep.subr.bf16.mxu0 0
    %329 = vmatpush2.bf16.msra.mxu0 0
    %330 = vmatprep.subr.bf16.mxu0 0
    %331 = vmatpush2.bf16.msra.mxu0 0
    %332 = vmatprep.subr.bf16.mxu0 0
    %333 = vmatpush2.bf16.msra.mxu0 0
    %334 = vmatprep.subr.bf16.mxu0 0
    %335 = vmatpush2.bf16.msra.mxu0 0
    %336 = vmatprep.subr.bf16.mxu0 0
    %337 = vmatpush2.bf16.msra.mxu0 0
    %338 = vmatprep.subr.bf16.mxu0 0
    %339 = vmatpush2.bf16.msra.mxu0 0
    %340 = vmatprep.subr.bf16.mxu0 0
    %341 = vmatpush2.bf16.msra.mxu0 0
    %342 = vmatprep.mubr.bf16.mxu0 0
    %343 = vmatmul.mubr.bf16.gmra.mxu0 %v257
    %v344 = vpop.f32.mrf.mxu0
    %v345 = vadd.f32 %v261, %v344
    %v346 = vpop.f32.mrf.mxu0
    %v347 = vpop.f32.mrf.mxu0
    %v348 = vpop.f32.mrf.mxu0
    %349 = vdwg.mxu0
    %v350 = vmax.f32 %v345, 0.0
    %v351 = vpack.c.bf16 %v350, %v350
    %v352 = vlaneseq
    %v353 = vshrl.u32 %v352, 7
    %v354 = vsub.s32 3, %v353
    %v355 = vrot.slane %v58, %v354
    %v372 = vunpack.c.l.b16 %v147
    %v373 = vunpack.c.l.b16 %v148
    %v374 = vunpack.c.l.b16 %v149
    %v375 = vunpack.c.l.b16 %v150
    %v376 = vunpack.c.l.b16 %v151
    %v377 = vunpack.c.l.b16 %v152
    %v378 = vunpack.c.l.b16 %v153
    %v379 = vunpack.c.l.b16 %v154
    %v380 = vunpack.c.l.b16 %v155
    %v381 = vunpack.c.l.b16 %v156
    %v382 = vunpack.c.l.b16 %v157
    %v383 = vunpack.c.l.b16 %v158
    %v384 = vunpack.c.l.b16 %v159
    %v385 = vunpack.c.l.b16 %v160
    %v386 = vunpack.c.l.b16 %v161
    %v387 = vunpack.c.l.b16 %v162
    %v388 = vpack.c.b16 %v373, %v372
    %v389 = vpack.c.b16 %v375, %v374
    %v390 = vpack.c.b16 %v377, %v376
    %v391 = vpack.c.b16 %v379, %v378
    %v392 = vpack.c.b16 %v381, %v380
    %v393 = vpack.c.b16 %v383, %v382
    %v394 = vpack.c.b16 %v385, %v384
    %v395 = vpack.c.b16 %v387, %v386
    %404 = vmatprep.subr.bf16.mxu0 0
    %405 = vmatpush1.bf16.msra.mxu0 %v395
    %406 = vmatprep.subr.bf16.mxu0 0
    %407 = vmatpush1.bf16.msra.mxu0 %v394
    %408 = vmatprep.subr.bf16.mxu0 0
    %409 = vmatpush1.bf16.msra.mxu0 %v393
    %410 = vmatprep.subr.bf16.mxu0 0
    %411 = vmatpush1.bf16.msra.mxu0 %v392
    %412 = vmatprep.subr.bf16.mxu0 0
    %413 = vmatpush1.bf16.msra.mxu0 %v391
    %414 = vmatprep.subr.bf16.mxu0 0
    %415 = vmatpush1.bf16.msra.mxu0 %v390
    %416 = vmatprep.subr.bf16.mxu0 0
    %417 = vmatpush1.bf16.msra.mxu0 %v389
    %418 = vmatprep.subr.bf16.mxu0 0
    %419 = vmatpush1.bf16.msra.mxu0 %v388
    %420 = vmatprep.subr.bf16.mxu0 0
    %421 = vmatpush2.bf16.msra.mxu0 0
    %422 = vmatprep.subr.bf16.mxu0 0
    %423 = vmatpush2.bf16.msra.mxu0 0
    %424 = vmatprep.subr.bf16.mxu0 0
    %425 = vmatpush2.bf16.msra.mxu0 0
    %426 = vmatprep.subr.bf16.mxu0 0
    %427 = vmatpush2.bf16.msra.mxu0 0
    %428 = vmatprep.subr.bf16.mxu0 0
    %429 = vmatpush2.bf16.msra.mxu0 0
    %430 = vmatprep.subr.bf16.mxu0 0
    %431 = vmatpush2.bf16.msra.mxu0 0
    %432 = vmatprep.subr.bf16.mxu0 0
    %433 = vmatpush2.bf16.msra.mxu0 0
    %434 = vmatprep.subr.bf16.mxu0 0
    %435 = vmatpush2.bf16.msra.mxu0 0
    %436 = vmatprep.mubr.bf16.mxu0 0
    %437 = vmatmul.mubr.bf16.gmra.mxu0 %v351
    %v438 = vpop.f32.mrf.mxu0
    %v439 = vadd.f32 %v355, %v438
    %v440 = vpop.f32.mrf.mxu0
    %v441 = vpop.f32.mrf.mxu0
    %v442 = vpop.f32.mrf.mxu0
    %443 = vdwg.mxu0
    %v444 = vlaneseq
    %v445 = vand.u32 %v444, 127
    %vm446 = vcmp.lt.s32.totalorder %v445, 3
    %v447 = vsel %vm446, %v439, -inf
    %448 = vmax.xlane.f32.xlu0 %v447
    %v449 = vpop.xlane.xlu0 %448
    %v450 = vsub.f32 %v447, %v449
    %v451 = vmul.f32 %v450, 1.442695
    %v452 = vpow.pop %v451
    %453 = vadd.xlane.f32.xlu0 %v452
    %v454 = vpop.xlane.xlu0 %453
    %v455 = vrcp.pop %v454
    %v456 = vmul.f32 %v452, %v455
    %vm457 = vcmask 23552
    %458 = vst.msk [vmem:[%s3] sm:$0xff] %vm457, %v456
    %460 = vrot.lane.b32.xlu0 %v439, 125
    %v461 = vpop.permute.xlu0 %460
    %vm463 = vcmask 7168
    %464 = vst.msk [vmem:[%s4] sm:$0xff] %vm463, %v461
    // Predicated region
    $region26: #{tpu_custom_call.1} parent=1 // pred_check
      _
    $region27: #{tpu_custom_call.1} parent=1 // pred_check_branch
      %466 = sbr.rel (0) target = $region29
    $region28: #{tpu_custom_call.1} parent=1 // pred_region
      _
    $region29: #{tpu_custom_call.1} parent=1 // pred_fallthru
      _
    // Predicated region
    $region30: #{tpu_custom_call.1} parent=1 // pred_check
      _
    $region31: #{tpu_custom_call.1} parent=1 // pred_check_branch
      %468 = sbr.rel (0) target = $region33
    $region32: #{tpu_custom_call.1} parent=1 // pred_region
      _
    $region33: #{tpu_custom_call.1} parent=1 // pred_fallthru
      _
    // Predicated region
    $region34: #{tpu_custom_call.1} parent=1 // pred_check
      _
    $region35: #{tpu_custom_call.1} parent=1 // pred_check_branch
      %470 = sbr.rel (0) target = $region37
    $region36: #{tpu_custom_call.1} parent=1 // pred_region
      _
    $region37: #{tpu_custom_call.1} parent=1 // pred_fallthru
      _
    // Predicated region
    $region38: #{tpu_custom_call.1} parent=1 // pred_check
      _
    $region39: #{tpu_custom_call.1} parent=1 // pred_check_branch
      %472 = sbr.rel (0) target = $region41
    $region40: #{tpu_custom_call.1} parent=1 // pred_region
      _
    $region41: #{tpu_custom_call.1} parent=1 // pred_fallthru
      _
    %473 = vsyncpa [#allocation3], 1
    %474 = vsyncpa [#allocation5], 1

</llo_original>
